<compile_context>
chip_gen: v7x
topology: tpu7x:2x2x1
jax: 0.10.0
libtpu: 0.0.40
codegen_flags: <defaults>
</compile_context>

<pallas_src>
import math

import jax
import jax.numpy as jnp
from jax.experimental import pallas as pl
from jax.experimental.pallas import tpu as pltpu


def _snake_kernel(x_ref, ab_ref, o_ref):
    x = x_ref[...].astype(jnp.float32)          # (tile_rows, tile_w)
    ab = ab_ref[...]                            # (2, tile_w) float32
    a = ab[0:1, :]                              # broadcasts over rows
    inv_a = ab[1:2, :]                          # 0 where a == 0
    s = jnp.sin(a * x)
    # a == 0 lanes: sin(0) == 0 and inv_a == 0, so the result is exactly x for
    # finite inputs — matches torch.where(a == 0, x, addcdiv(x, sin(ax)^2, a)).
    o_ref[...] = (x + (s * s) * inv_a).astype(o_ref.dtype)


def _min_sublane(dtype) -> int:
    # Packed-sublane multiple: 8 for f32, 16 for bf16, 32 for int8/fp8.
    bits = jnp.dtype(dtype).itemsize * 8
    return max(8, 256 // bits)


def _round_up(x: int, m: int) -> int:
    return -(-x // m) * m


def _choose_fold(rows: int, h: int, itemsize: int, max_width_bytes: int) -> int:
    """Smallest fold f with (f*h) % 128 == 0 and rows % f == 0 (lane-dense stores)."""
    if h % 128 == 0 or rows < 2:
        return 1
    base = 128 // math.gcd(h, 128)
    f = base
    while f <= rows and f <= 1024:
        if rows % f == 0 and f * h * itemsize <= max_width_bytes:
            return f
        f += base
    # TODO(synk): when no fold divides `rows`, we fall back to masked sub-128
    # stores instead of a pad/concat tail path (pad or concat would add a full
    # extra HBM pass on this mem-bound op).
    return 1


def snake(x: jax.Array, a: jax.Array, *,
          target_block_bytes: int = 4 * 1024 * 1024,
          min_row_blocks: int = 8) -> jax.Array:
    """Apply the Snake activation. x: (..., H), a: (H,)."""
    orig_shape = x.shape
    H = orig_shape[-1]
    assert a.shape == (H,), f"a must have shape ({H},), got {a.shape}"

    x2d = x.reshape(-1, H)
    rows = x2d.shape[0]
    itemsize = jnp.dtype(x.dtype).itemsize
    sub = _min_sublane(x.dtype)

    # Precompute [a; inv_a] once (f32), outside the hot loop.
    a_f = a.astype(jnp.float32).reshape(1, H)
    safe_a = jnp.where(a_f == 0.0, 1.0, a_f)
    inv_f = jnp.where(a_f == 0.0, 0.0, 1.0 / safe_a)
    ab = jnp.concatenate([a_f, inv_f], axis=0)          # (2, H)

    # Lane-dense folding: pack `fold` logical rows into one physical row whose
    # width is a multiple of 128, so every store is an unmasked full vreg.
    fold = _choose_fold(rows, H, itemsize, max(128 * itemsize,
                                               target_block_bytes // sub))
    if fold > 1:
        x2d = x2d.reshape(rows // fold, fold * H)
        ab = jnp.tile(ab, (1, fold))                     # (2, fold*H)

    R, W = x2d.shape

    # Width tile: prefer the full width; only chunk (multiple of 128) when even
    # a minimal (sub, W) slab would blow the block budget.
    if W % 128 == 0 and sub * W * itemsize > target_block_bytes:
        tile_w = max(128, (target_block_bytes // (sub * itemsize)) // 128 * 128)
        tile_w = min(tile_w, W)
    else:
        tile_w = W

    # Row tile: ~target_block_bytes per block, but capped so the row axis has
    # at least `min_row_blocks` blocks (keeps both v7x TensorCores busy).
    tr_budget = max(sub, (target_block_bytes // (tile_w * itemsize)) // sub * sub)
    tr_parallel = max(sub, _round_up(pl.cdiv(R, min_row_blocks), sub))
    tr = min(tr_budget, tr_parallel)
    tile_rows = R if tr >= R else tr                     # full extent is legal

    grid = (pl.cdiv(R, tile_rows), pl.cdiv(W, tile_w))

    # VMEM: double-buffered in + out + f32 intermediates; >=32 MiB (v5e scoped
    # default is only 16 MiB), <=48 MiB (v7x has 64 MiB physical).
    block_bytes = tile_rows * tile_w * max(itemsize, 4)
    vmem_limit = int(min(48 * 1024 * 1024,
                         max(32 * 1024 * 1024, 6 * block_bytes)))

    out = pl.pallas_call(
        _snake_kernel,
        out_shape=jax.ShapeDtypeStruct((R, W), x.dtype),
        grid_spec=pltpu.PrefetchScalarGridSpec(
            num_scalar_prefetch=0,
            grid=grid,
            in_specs=[
                pl.BlockSpec((tile_rows, tile_w), lambda i, j: (i, j)),
                pl.BlockSpec((2, tile_w), lambda i, j: (0, j)),
            ],
            out_specs=pl.BlockSpec((tile_rows, tile_w), lambda i, j: (i, j)),
        ),
        compiler_params=pltpu.CompilerParams(
            dimension_semantics=("parallel", "parallel"),
            vmem_limit_bytes=vmem_limit,
        ),
    )(x2d, ab)

    return out.reshape(orig_shape)


def init_snake_a(key, hidden: int, a_value=None, exp_rate: float = 1.0,
                 dtype=jnp.float32) -> jax.Array:
    """Deterministic stand-in for Snake.initialize_parameters."""
    if a_value is not None:
        return jnp.full((hidden,), a_value, dtype=dtype)
    return (jax.random.exponential(key, (hidden,), dtype=dtype) / exp_rate)


def _snake_ref(x, a):
    # Pure-JAX reference mirroring the PyTorch forward (where/addcdiv form).
    a_b = a.reshape((1,) * (x.ndim - 1) + a.shape)
    safe_a = jnp.where(a_b == 0, 1.0, a_b)
    return jnp.where(a_b == 0, x, x + jnp.square(jnp.sin(a_b * x)) / safe_a)


# TODO(synk): SnakeFunction.backward (the custom gradient) is not implemented;
# only the forward pass is provided as a Pallas kernel.

if __name__ == "__main__":
    key = jax.random.PRNGKey(0)
    kx, ka, kx2, kx3 = jax.random.split(key, 4)

    # 1) Narrow hidden (H=32): lane folding packs 4 rows -> 128 lanes.
    batch, seq, hidden = 2, 8, 32
    x = jax.random.normal(kx, (batch, seq, hidden), dtype=jnp.float32)
    a = init_snake_a(ka, hidden, a_value=None, exp_rate=1.0, dtype=jnp.float32)
    a = a.at[0].set(0.0)                       # exercise the a == 0 lanes
    out = snake(x, a)
    jax.block_until_ready(out)
    ref = _snake_ref(x, a)
    assert out.shape == x.shape and out.dtype == x.dtype
    assert jnp.allclose(out, ref, atol=1e-6, rtol=1e-5)

    # 2) Wide hidden (256), odd row count, tiny block budget: multi-block row
    #    grid with a masked partial last block (no host pad / slice).
    x2 = jax.random.normal(kx2, (3, 33, 256), dtype=jnp.float32)
    a2 = init_snake_a(ka, 256, a_value=0.5, dtype=jnp.float32)
    out2 = snake(x2, a2, target_block_bytes=64 * 1024)
    jax.block_until_ready(out2)
    ref2 = _snake_ref(x2, a2)
    assert out2.shape == x2.shape and out2.dtype == x2.dtype
    assert jnp.allclose(out2, ref2, atol=1e-6, rtol=1e-5)

    # 3) Non-power-of-two narrow hidden (H=48): lcm-based folding (fold=8).
    x3 = jax.random.normal(kx3, (4, 6, 48), dtype=jnp.float32)
    a3 = init_snake_a(ka, 48, a_value=None, exp_rate=1.0, dtype=jnp.float32)
    out3 = snake(x3, a3)
    jax.block_until_ready(out3)
    assert jnp.allclose(out3, _snake_ref(x3, a3), atol=1e-6, rtol=1e-5)

    # 4) bf16 input: f32 compute, bf16 store.
    xb = x.astype(jnp.bfloat16)
    ab16 = a.astype(jnp.bfloat16)
    outb = snake(xb, ab16)
    jax.block_until_ready(outb)
    refb = _snake_ref(xb.astype(jnp.float32), ab16.astype(jnp.float32))
    assert outb.dtype == jnp.bfloat16
    assert jnp.allclose(outb.astype(jnp.float32), refb, atol=2e-2, rtol=2e-2)

    print("KERNEL_OK")
</pallas_src>

<mosaic_0001>
module attributes {stable_mosaic.version = 11 : i64} {
  func.func @_snake_kernel(%arg0: i32, %arg1: i32, %arg2: memref<4x128xf32, #tpu.memory_space<vmem>>, %arg3: memref<2x128xf32, #tpu.memory_space<vmem>>, %arg4: memref<4x128xf32, #tpu.memory_space<vmem>>) attributes {dimension_semantics = [#tpu.dimension_semantics<parallel>, #tpu.dimension_semantics<parallel>], iteration_bounds = array<i64: 1, 1>, scalar_prefetch = 0 : i64, scratch_operands = 0 : i64, tpu.core_type = #tpu.core_type<tc>, window_params = [{transform_indices = @transform_0, window_bounds = array<i64: 4, 128>}, {transform_indices = @transform_1, window_bounds = array<i64: 2, 128>}, {transform_indices = @transform_2, window_bounds = array<i64: 4, 128>}]} {
    %c0 = arith.constant 0 : index
    %c0_0 = arith.constant 0 : index
    %0 = vector.load %arg2[%c0, %c0_0] : memref<4x128xf32, #tpu.memory_space<vmem>>, vector<4x128xf32>
    %c0_1 = arith.constant 0 : index
    %c0_2 = arith.constant 0 : index
    %1 = vector.load %arg3[%c0_1, %c0_2] : memref<2x128xf32, #tpu.memory_space<vmem>>, vector<2x128xf32>
    %2 = vector.extract_strided_slice %1 {offsets = [0, 0], sizes = [1, 128], strides = [1, 1]} : vector<2x128xf32> to vector<1x128xf32>
    %3 = vector.extract_strided_slice %1 {offsets = [1, 0], sizes = [1, 128], strides = [1, 1]} : vector<2x128xf32> to vector<1x128xf32>
    %4 = vector.broadcast %2 : vector<1x128xf32> to vector<4x128xf32>
    %5 = arith.mulf %4, %0 : vector<4x128xf32>
    %6 = math.sin %5 : vector<4x128xf32>
    %7 = arith.mulf %6, %6 : vector<4x128xf32>
    %8 = vector.broadcast %3 : vector<1x128xf32> to vector<4x128xf32>
    %9 = arith.mulf %7, %8 : vector<4x128xf32>
    %10 = arith.addf %0, %9 : vector<4x128xf32>
    %c0_3 = arith.constant 0 : index
    %c0_4 = arith.constant 0 : index
    %11 = vector.load %arg4[%c0_3, %c0_4] : memref<4x128xf32, #tpu.memory_space<vmem>>, vector<4x128xf32>
    tpu.vector_store %arg4[%c0_3, %c0_4], %10 {strides = array<i32>} : memref<4x128xf32, #tpu.memory_space<vmem>>, vector<4x128xf32>,
    return
  }
  func.func @transform_0(%arg0: i32, %arg1: i32) -> (i32, i32) {
    %c0_i32 = arith.constant 0 : i32
    return %arg0, %arg1 : i32, i32
  }
  func.func @transform_1(%arg0: i32, %arg1: i32) -> (i32, i32) {
    %c0_i32 = arith.constant 0 : i32
    %c0_i32_0 = arith.constant 0 : i32
    return %c0_i32, %arg1 : i32, i32
  }
  func.func @transform_2(%arg0: i32, %arg1: i32) -> (i32, i32) {
    %c0_i32 = arith.constant 0 : i32
    return %arg0, %arg1 : i32, i32
  }
}

</mosaic_0001>

<llo_original>
// kernel: tpu_custom_call.1
$region0: #{tpu_custom_call.1}
  #allocation0 [shape = 'u32[]', space=smem, size = 0x4, offset = 0x4, fixed_abs, tag = 'smem constant byte address 0x4 - core index']
  #allocation1 [shape = 'u32[144,128]{1,0:T(1,128)}', space=vmem, size = 0x12000, scoped, tag = 'internal scratch']
  %s0 = inlined_call_operand.hbm [shape: f32[4,128], index: 0, kind: input, shape index: {}]
  %s1 = inlined_call_operand.vmem [shape: f32[2,128], index: 1, kind: input, shape index: {}]
  %s2 = inlined_call_operand.hbm [shape: f32[4,128], index: 2, kind: output, shape index: {}]
  %s3 = sld [smem:[#allocation0]]
  $region22: #{tpu_custom_call.1} parent=0
    _
  %s5 = ssub.s32 1, %s3
  %s6 = scalar_select 0, %s5, %s3
  $region1: #{tpu_custom_call.1} parent=0
    #allocation2 [shape = 'u8[2048]{0}', space=vmem, size = 0x800, scoped, tag = 'input window, operand 0, single buffered']
    #allocation3 [shape = 's32[1]{0}', space=sflag, size = 0x4, scoped, tag = 'scoped memory for tpu_custom_call.1']
    #allocation4 [shape = 's32[1]{0}', space=sflag, size = 0x4, scoped, tag = 'scoped memory for tpu_custom_call.1']
    #allocation5 [shape = 'u8[2048]{0}', space=vmem, size = 0x800, scoped, tag = 'output window, operand 0, single buffered']
    %7 = vsyncpa [#allocation3], 0
    %8 = vsyncpa [#allocation4], 0
    // Predicated region
    $region2: #{tpu_custom_call.1} parent=1 // pred_check
      _
    $region3: #{tpu_custom_call.1} parent=1 // pred_check_branch
      %10 = sbr.rel (0) target = $region5
    $region4: #{tpu_custom_call.1} parent=1 // pred_region
      %s12 = ssub.s32 64, 64
      %13 = vsyncadd [#allocation3], %s12
      %s15 = sshll.u32 [#allocation2], 4
      %s16 = int_to_ptr.vmem [resolvable:$true] %s15
      %18 = dma.hbm_to_vmem [thread:$0]  %s0, 64, %s16, [#allocation3]
    $region5: #{tpu_custom_call.1} parent=1 // pred_fallthru
      _
    // Predicated region
    $region6: #{tpu_custom_call.1} parent=1 // pred_check
      _
    $region7: #{tpu_custom_call.1} parent=1 // pred_check_branch
      %20 = sbr.rel (0) target = $region9
    $region8: #{tpu_custom_call.1} parent=1 // pred_region
      _
    $region9: #{tpu_custom_call.1} parent=1 // pred_fallthru
      _
    // Predicated region
    $region10: #{tpu_custom_call.1} parent=1 // pred_check
      _
    $region11: #{tpu_custom_call.1} parent=1 // pred_check_branch
      %22 = sbr.rel (0) target = $region13
    $region12: #{tpu_custom_call.1} parent=1 // pred_region
      %23 = dma.done [#allocation3], 64
    $region13: #{tpu_custom_call.1} parent=1 // pred_fallthru
      _
    %v24 = vld [vmem:[#allocation2] sm:$0xf]
    %v25 = vld [vmem:[%s1] sm:$0x3]
    %v26 = vlaneseq
    %v27 = vshrl.u32 %v26, 7
    %v28 = vsub.s32 0, %v27
    %v29 = vrot.slane %v25, %v28
    %v30 = vmul.f32 %v29, %v24
    %v31 = vand.u32 2147483647, %v30
    %vm32 = vcmp.le.f32.partialorder %v31, 0.7853982
    %vm33 = vcmp.lt.s32.totalorder %v30, 0
    %v34 = vand.u32 %v30, 2139095040
    %v35 = vshrl.u32 %v34, 23
    %v36 = vsub.s32 %v35, 127
    %v37 = vand.u32 2147483647, %v30
    %v38 = vand.u32 %v37, 8388607
    %v39 = vor.u32 %v38, 8388608
    %v40 = vsub.s32 0, %v39
    %v41 = vadd.s32 %v36, 1
    %vm42 = vcmp.gt.s32.totalorder %v41, 0
    %v43 = vsel %vm42, %v41, 0
    %v44 = vshrl.u32 %v43, 5
    %v45 = vand.u32 %v43, 31
    %v46 = vsub.s32 32, %v45
    %v47 = vshrl.u32 683565275, %v46
    %v48 = vshll.u32 683565275, %v45
    %v49 = vshrl.u32 2475754826, %v46
    %v50 = vor.u32 %v48, %v49
    %v51 = vshll.u32 2475754826, %v45
    %v52 = vshrl.u32 2131351028, %v46
    %v53 = vor.u32 %v51, %v52
    %v54 = vshll.u32 2131351028, %v45
    %v55 = vshrl.u32 2102212464, %v46
    %v56 = vor.u32 %v54, %v55
    %v57 = vshll.u32 2102212464, %v45
    %v58 = vshrl.u32 920167782, %v46
    %v59 = vor.u32 %v57, %v58
    %v60 = vshll.u32 920167782, %v45
    %v61 = vshrl.u32 1326507024, %v46
    %v62 = vor.u32 %v60, %v61
    %vm63 = vcmp.lt.s32.totalorder %v44, 1
    %vm64 = vcmp.lt.s32.totalorder %v44, 2
    %vm65 = vcmp.lt.s32.totalorder %v44, 3
    %vm66 = vcmp.lt.s32.totalorder %v44, 4
    %v67 = vsel %vm63, %v47, %v50
    %v68 = vsel %vm66, %v56, 2102212464
    %v69 = vsel %vm65, %v53, %v68
    %v70 = vsel %vm64, %v67, %v69
    %v71 = vsel %vm63, %v50, %v53
    %v72 = vsel %vm66, %v59, 920167782
    %v73 = vsel %vm65, %v56, %v72
    %v74 = vsel %vm64, %v71, %v73
    %v75 = vsel %vm63, %v53, %v56
    %v76 = vsel %vm66, %v62, 1326507024
    %v77 = vsel %vm65, %v59, %v76
    %v78 = vsel %vm64, %v75, %v77
    %v79 = vshll.u32 %v39, 8
    %v80 = vmul.u32.u64.compose %v79, %v78
    %v81 = vextract.low.u32 %v80
    %v82 = vextract.high.u32 %v80
    %v83 = vmul.u32.u64.compose %v79, %v74
    %v84 = vextract.low.u32 %v83
    %v85 = vextract.high.u32 %v83
    %v86 = vmul.u32 %v79, %v70
    %v87 = vadd.s32 %v82, %v84
    %vm88 = vc.u32 %v82, %v84
    %v89 = vadd.s32 %v85, 1
    %v90 = vsel %vm88, %v89, %v85
    %v91 = vadd.s32 %v86, %v90
    %v92 = vadd.s32 %v91, 536870912
    %v93 = vshrl.u32 %v92, 30
    %v94 = vshll.u32 %v93, 30
    %v95 = vsub.s32 %v91, %v94
    %vm96 = vcmp.lt.s32.totalorder %v95, 0
    %v97 = vsub.s32 0, %v95
    %v98 = vsel %vm96, %v97, %v95
    %v99 = vclz %v98
    %v100 = vsub.s32 %v99, 2
    %vm101 = vcmp.gt.s32.totalorder 0, %v100
    %v102 = vsel %vm101, 0, %v100
    %v103 = vsub.s32 32, %v102
    %v104 = vshll.u32 %v95, %v102
    %v105 = vshrl.u32 %v87, %v103
    %v106 = vor.u32 %v104, %v105
    %v107 = vsub.s32 4294967266, %v102
    %v108 = vadd.s32 %v107, 127
    %v109 = vshll.u32 %v108, 23
    %v110 = vor.u32 4788187, %v109
    %v111 = vand.u32 2147483647, %v110
    %v113 = vcvt.s32.f32 %v106
    %v114 = vmul.f32 %v113, %v111
    %v115 = vxor.u32 %v114, 2147483648
    %v116 = vsel %vm33, %v115, %v114
    %v117 = vsub.s32 4, %v93
    %v118 = vsel %vm33, %v117, %v93
    %v119 = vsel %vm32, %v30, %v116
    %v120 = vsel %vm32, 0, %v118
    %v121 = vcosq.f32.pop %v119
    %v122 = vsinq.f32.pop %v119
    %vm123 = vweird.f32 %v30
    %v124 = vadd.s32 %v120, 3
    %v125 = vand.u32 %v124, 3
    %vm126 = vcmp.lt.s32.totalorder %v125, 2
    %vm127 = vcmp.eq.s32.totalorder %v125, 0
    %v128 = vxor.u32 %v122, 2147483648
    %v129 = vsel %vm127, %v121, %v128
    %vm130 = vcmp.eq.s32.totalorder %v125, 2
    %v131 = vxor.u32 %v121, 2147483648
    %v132 = vsel %vm130, %v131, %v122
    %v133 = vsel %vm126, %v129, %v132
    %v134 = vsel %vm123, nan, %v133
    %v135 = vmul.f32 %v134, %v134
    %v136 = vlaneseq
    %v137 = vshrl.u32 %v136, 7
    %v138 = vsub.s32 1, %v137
    %v139 = vrot.slane %v25, %v138
    %v140 = vmul.f32 %v135, %v139
    %v141 = vadd.f32 %v24, %v140
    %142 = vst [vmem:[#allocation5] sm:$0xf] %v141
    // Predicated region
    $region14: #{tpu_custom_call.1} parent=1 // pred_check
      _
    $region15: #{tpu_custom_call.1} parent=1 // pred_check_branch
      %144 = sbr.rel (0) target = $region17
    $region16: #{tpu_custom_call.1} parent=1 // pred_region
      %s146 = ssub.s32 64, 64
      %147 = vsyncadd [#allocation4], %s146
      %s149 = sshll.u32 [#allocation5], 4
      %s150 = int_to_ptr.vmem [resolvable:$true] %s149
      %152 = dma.vmem_to_hbm [thread:$0]  %s150, 64, %s2, [#allocation4]
    $region17: #{tpu_custom_call.1} parent=1 // pred_fallthru
      _
    // Predicated region
    $region18: #{tpu_custom_call.1} parent=1 // pred_check
      _
    $region19: #{tpu_custom_call.1} parent=1 // pred_check_branch
      %154 = sbr.rel (0) target = $region21
    $region20: #{tpu_custom_call.1} parent=1 // pred_region
      %155 = dma.done [#allocation4], 64
    $region21: #{tpu_custom_call.1} parent=1 // pred_fallthru
      _
    %156 = vsyncpa [#allocation3], 1
    %157 = vsyncpa [#allocation4], 1

</llo_original>
